<compile_context>
chip_gen: v5e
topology: v5e:2x2
jax: 0.10.0
libtpu: 0.0.40
codegen_flags: <defaults>
</compile_context>

<pallas_src>
import functools
import math

import numpy as np
import jax
import jax.numpy as jnp
from jax.experimental import pallas as pl
from jax.experimental.pallas import tpu as pltpu


def _round_up(x, m):
    return (x + m - 1) // m * m


def _cdiv(a, b):
    return -(-a // b)


def _pick_vmem_limit_bytes():
    cap = None
    try:
        cap = getattr(pltpu.get_tpu_info(), "vmem_capacity_bytes", None)
    except Exception:
        cap = None
    if not cap:
        cap = 64 * 1024 * 1024          # conservative: v7x physical VMEM / TC
    return int(min(cap * 3 // 4, 96 * 1024 * 1024))


# ---------------------------------------------------------------------------
# Phase 1: per-metapath node-sum of tanh(fc(x)).
# grid = (P, node_tiles) -> dimension_semantics ("parallel", "arbitrary").
# The (per-metapath) output block stays resident across the node-tile axis.
# ---------------------------------------------------------------------------
def _sums_kernel(n_valid, has_pad, transposed, e_ref, w_ref, b_ref, s_ref):
    i = pl.program_id(1)
    num_i = pl.num_programs(1)
    tn = e_ref.shape[0]

    if transposed:
        # (D, tn): node axis on the 128-lane axis -> dense vregs when D < 128.
        h = jax.lax.dot_general(
            w_ref[...], e_ref[...],
            dimension_numbers=(((1,), (1,)), ((), ())),
            preferred_element_type=jnp.float32)
        h = jnp.tanh(h + b_ref[...])            # b_ref: (D, 1)
        node_axis = 1
    else:
        # (tn, D): natural layout when D already fills the lanes.
        h = jnp.dot(e_ref[...], w_ref[...], preferred_element_type=jnp.float32)
        h = jnp.tanh(h + b_ref[...])            # b_ref: (1, D)
        node_axis = 0

    @pl.when(i == 0)
    def _():
        s_ref[...] = jnp.zeros_like(s_ref)

    def _accum(hv):
        s_ref[...] += jnp.sum(hv, axis=node_axis, keepdims=True)

    if has_pad:
        # Only the last node tile carries padded rows: full tiles stay
        # iota/select-free.
        @pl.when(i < num_i - 1)
        def _():
            _accum(h)

        @pl.when(i == num_i - 1)
        def _():
            node_idx = i * tn + jax.lax.broadcasted_iota(
                jnp.int32, h.shape, node_axis)
            _accum(jnp.where(node_idx < n_valid, h, 0.0))
    else:
        _accum(h)


# ---------------------------------------------------------------------------
# Phase 2: z = sum_p beta_p * embeds_p   (lane-dense [*, 128] view).
# grid = (row_tiles, P) -> ("parallel", "arbitrary"); output block revisited
# and accumulated across the trailing P axis (f32 accumulation).
# ---------------------------------------------------------------------------
def _mix_kernel(beta_ref, e_ref, o_ref):
    p = pl.program_id(1)

    @pl.when(p == 0)
    def _():
        o_ref[...] = jnp.zeros_like(o_ref)

    o_ref[...] += beta_ref[p] * e_ref[...].astype(jnp.float32)


# ---------------------------------------------------------------------------
# Wrapper
# ---------------------------------------------------------------------------
def attention_forward(embeds, w, b, att, *, matmul_dtype=None, node_tile=None,
                      mix_rows=None, vmem_limit_bytes=None, interpret=False):
    """Semantic attention over metapath embeddings.

    embeds: [P, N, D]  stacked per-metapath node embeddings
    w:      [D, D]     nn.Linear weight ([out, in])
    b:      [D]        nn.Linear bias
    att:    [1, D]     attention vector
    matmul_dtype: None (f32) or jnp.bfloat16 — dtype of the single shared
        embeds / W copy fed to both phases (valid on v5e/v6e/v7x; the MXU is
        bf16-native everywhere, and tanh/softmax/accumulation stay f32).
    """
    P, N, D = embeds.shape
    out_dtype = embeds.dtype
    lane = 128

    work_dtype = np.dtype(matmul_dtype if matmul_dtype is not None
                          else jnp.float32)
    itemsize = work_dtype.itemsize

    if vmem_limit_bytes is None:
        vmem_limit_bytes = _pick_vmem_limit_bytes()

    # ---- node tiling (phase 1) --------------------------------------------
    # tn multiple of 8 (sublanes) and of 128/gcd(D,128) so n_pad*D % 128 == 0
    # (exact lane-dense reshape for phase 2).
    tn_unit = math.lcm(8, lane // math.gcd(D, lane))
    if node_tile is None:
        p1_budget = vmem_limit_bytes // 3        # headroom for W + pipeline
        node_tile = max(tn_unit,
                        min(8192, p1_budget // max(1, 2 * D * itemsize)))
    num_tiles = max(1, _cdiv(N, node_tile))
    tn = _round_up(_cdiv(N, num_tiles), tn_unit)
    n_pad = tn * num_tiles
    has_pad = n_pad != N

    # ---- the ONE shared working copy of embeds ------------------------------
    emb = embeds
    if emb.dtype != work_dtype:
        emb = emb.astype(work_dtype)
    if has_pad:
        emb = jnp.pad(emb, ((0, 0), (0, n_pad - N), (0, 0)))

    transposed = D < lane     # put nodes on the lane axis when D is lane-sparse
    if transposed:
        w_in = w.astype(work_dtype)                        # [out, in]
        b_in = b.astype(jnp.float32).reshape(D, 1)
        b_spec = pl.BlockSpec((D, 1), lambda p, i: (0, 0))
        sums_shape = jax.ShapeDtypeStruct((P, D, 1), jnp.float32)
        sums_spec = pl.BlockSpec((None, D, 1), lambda p, i: (p, 0, 0))
    else:
        w_in = w.astype(work_dtype).T                      # x @ w_in == x @ W.T
        b_in = b.astype(jnp.float32).reshape(1, D)
        b_spec = pl.BlockSpec((1, D), lambda p, i: (0, 0))
        sums_shape = jax.ShapeDtypeStruct((P, 1, D), jnp.float32)
        sums_spec = pl.BlockSpec((None, 1, D), lambda p, i: (p, 0, 0))
    w_spec = pl.BlockSpec((D, D), lambda p, i: (0, 0))

    score_cost = pl.CostEstimate(
        flops=int(2 * P * n_pad * D * D + 6 * P * n_pad * D),
        transcendentals=int(P * n_pad * D),
        bytes_accessed=int(P * n_pad * D * itemsize + D * D * itemsize
                           + 2 * D * 4 + P * D * 4),
    )
    sums = pl.pallas_call(
        functools.partial(_sums_kernel, N, has_pad, transposed),
        out_shape=sums_shape,
        grid=(P, num_tiles),
        in_specs=[
            pl.BlockSpec((None, tn, D), lambda p, i: (p, i, 0)),   # embeds tile
            w_spec,
            b_spec,
        ],
        out_specs=sums_spec,
        compiler_params=pltpu.CompilerParams(
            dimension_semantics=("parallel", "arbitrary"),
            vmem_limit_bytes=vmem_limit_bytes),
        cost_estimate=score_cost,
        interpret=interpret,
    )(emb, w_in, b_in)

    # beta = softmax_p( att . mean_n tanh(fc(x_p)) ) — P scalars, done in XLA.
    att_f = att.astype(jnp.float32).reshape(1, D)
    sp = sums.reshape(P, D) * (1.0 / N)
    beta = jax.nn.softmax(jnp.sum(sp * att_f, axis=-1))            # [P] f32

    # ---- phase 2: z = sum_p beta_p * embeds_p -------------------------------
    m_rows = (n_pad * D) // lane
    emb_flat = emb.reshape(P, m_rows, lane)      # free reshape of same buffer

    if mix_rows is None:
        p2_budget = vmem_limit_bytes // 2
        mix_rows = max(8, p2_budget // (lane * (2 * itemsize + 2 * 4)))
    if mix_rows >= m_rows:
        tm = m_rows
    else:
        tm = max(8, (int(mix_rows) // 8) * 8)
    grid_j = _cdiv(m_rows, tm)

    mix_cost = pl.CostEstimate(
        flops=int(3 * P * n_pad * D),
        transcendentals=0,
        bytes_accessed=int(P * n_pad * D * itemsize + n_pad * D * 4 + P * 4),
    )
    z_flat = pl.pallas_call(
        _mix_kernel,
        out_shape=jax.ShapeDtypeStruct((m_rows, lane), jnp.float32),
        grid=(grid_j, P),
        in_specs=[
            pl.BlockSpec(memory_space=pltpu.MemorySpace.SMEM),     # beta [P]
            pl.BlockSpec((None, tm, lane), lambda j, p: (p, j, 0)),
        ],
        out_specs=pl.BlockSpec((tm, lane), lambda j, p: (j, 0)),
        compiler_params=pltpu.CompilerParams(
            dimension_semantics=("parallel", "arbitrary"),
            vmem_limit_bytes=vmem_limit_bytes),
        cost_estimate=mix_cost,
        interpret=interpret,
    )(beta, emb_flat)

    z = z_flat.reshape(n_pad, D)[:N]
    return z.astype(out_dtype)


# ---------------------------------------------------------------------------
# Pure-JAX reference (matches what the kernel consumes: the weighted sum uses
# the same single work-dtype copy of embeds).
# ---------------------------------------------------------------------------
def attention_reference(embeds, w, b, att, matmul_dtype=None):
    x = embeds if matmul_dtype is None else embeds.astype(matmul_dtype)
    wm = w if matmul_dtype is None else w.astype(matmul_dtype)
    h = jnp.einsum('pnd,ed->pne', x, wm, preferred_element_type=jnp.float32)
    h = jnp.tanh(h + b.astype(jnp.float32)[None, None, :])
    sp = h.mean(axis=1)                                            # [P, D]
    scores = jnp.sum(sp * att.astype(jnp.float32).reshape(1, -1), axis=-1)
    beta = jax.nn.softmax(scores)                                  # [P]
    z = jnp.sum(x.astype(jnp.float32) * beta[:, None, None], axis=0)
    return z.astype(embeds.dtype)


if __name__ == "__main__":
    # P metapaths, N nodes, D hidden. N=200 exercises padded-row masking; the
    # node_tile=64 run exercises multi-tile accumulation + a multi-step
    # phase-2 grid.
    P, N, D = 4, 200, 32
    key = jax.random.PRNGKey(0)
    k_e, k_w, k_b, k_a = jax.random.split(key, 4)

    embeds = jax.random.normal(k_e, (P, N, D), dtype=jnp.float32)

    # Deterministic parameter init mirroring the module's __init__ shapes.
    gain = 1.414
    w_std = gain * (2.0 / (D + D)) ** 0.5
    w = w_std * jax.random.normal(k_w, (D, D), dtype=jnp.float32)      # fc.weight [out, in]
    b_bound = 1.0 / (D ** 0.5)
    b = jax.random.uniform(k_b, (D,), jnp.float32, -b_bound, b_bound)  # fc.bias
    a_std = gain * (2.0 / (1 + D)) ** 0.5
    att = a_std * jax.random.normal(k_a, (1, D), dtype=jnp.float32)    # att [1, D]

    ref = attention_reference(embeds, w, b, att)

    # f32 path, auto tiling (single node tile at this size).
    fwd = jax.jit(attention_forward)
    out = jax.block_until_ready(fwd(embeds, w, b, att))
    assert out.shape == (N, D)
    assert jnp.allclose(out, ref, atol=1e-4, rtol=1e-4), "f32 path mismatch"

    # f32 path exercising multi-tile phase-1 accumulation + last-tile masking
    # and a multi-step phase-2 grid.
    fwd_tiled = jax.jit(functools.partial(attention_forward, node_tile=64,
                                          mix_rows=8))
    out_tiled = jax.block_until_ready(fwd_tiled(embeds, w, b, att))
    assert jnp.allclose(out_tiled, ref, atol=1e-4, rtol=1e-4), "tiled path mismatch"

    # bf16-MXU path: single shared bf16 padded copy feeds both phases
    # (accumulation stays f32 in-kernel); compared against a bf16-matched ref.
    fwd_bf16 = jax.jit(functools.partial(attention_forward,
                                         matmul_dtype=jnp.bfloat16))
    out_bf16 = jax.block_until_ready(fwd_bf16(embeds, w, b, att))
    ref_bf16 = attention_reference(embeds, w, b, att, matmul_dtype=jnp.bfloat16)
    assert jnp.allclose(out_bf16, ref_bf16, atol=2e-2, rtol=2e-2), "bf16 path mismatch"

    print("KERNEL_OK")
</pallas_src>

<mosaic_0001>
module attributes {stable_mosaic.version = 11 : i64} {
  func.func @_sums_kernel(%arg0: i32, %arg1: i32, %arg2: memref<1x200x32xf32, #tpu.memory_space<vmem>>, %arg3: memref<32x32xf32, #tpu.memory_space<vmem>>, %arg4: memref<32x1xf32, #tpu.memory_space<vmem>>, %arg5: memref<1x32x1xf32, #tpu.memory_space<vmem>>) attributes {dimension_semantics = [#tpu.dimension_semantics<parallel>, #tpu.dimension_semantics<arbitrary>], iteration_bounds = array<i64: 4, 1>, scalar_prefetch = 0 : i64, scratch_operands = 0 : i64, tpu.core_type = #tpu.core_type<tc>, window_params = [{transform_indices = @transform_0, window_bounds = array<i64: 1, 200, 32>}, {pipeline_mode = #tpu.pipeline_mode<synchronous>, transform_indices = @transform_1, window_bounds = array<i64: 32, 32>}, {pipeline_mode = #tpu.pipeline_mode<synchronous>, transform_indices = @transform_2, window_bounds = array<i64: 32, 1>}, {transform_indices = @transform_3, window_bounds = array<i64: 1, 32, 1>}]} {
    %c0 = arith.constant 0 : index
    %c0_0 = arith.constant 0 : index
    %0 = vector.load %arg3[%c0, %c0_0] : memref<32x32xf32, #tpu.memory_space<vmem>>, vector<32x32xf32>
    %c0_1 = arith.constant 0 : index
    %c0_2 = arith.constant 0 : index
    %c0_3 = arith.constant 0 : index
    %1 = vector.load %arg2[%c0_1, %c0_2, %c0_3] : memref<1x200x32xf32, #tpu.memory_space<vmem>>, vector<1x200x32xf32>
    %2 = vector.shape_cast %1 : vector<1x200x32xf32> to vector<200x32xf32>
    %cst = arith.constant dense<0.000000e+00> : vector<32x200xf32>
    %3 = tpu.matmul %0, %2, %cst {dimension_numbers = #tpu.dot_dimension_numbers<[1], [1], [0], [0], [0, 0, 1, 0], [], []>} : vector<32x32xf32>, vector<200x32xf32>, vector<32x200xf32> -> vector<32x200xf32>
    %c0_4 = arith.constant 0 : index
    %c0_5 = arith.constant 0 : index
    %4 = vector.load %arg4[%c0_4, %c0_5] : memref<32x1xf32, #tpu.memory_space<vmem>>, vector<32x1xf32>
    %5 = vector.broadcast %4 : vector<32x1xf32> to vector<32x200xf32>
    %6 = arith.addf %3, %5 : vector<32x200xf32>
    %7 = math.tanh %6 : vector<32x200xf32>
    %c0_i32 = arith.constant 0 : i32
    %8 = arith.cmpi eq, %arg1, %c0_i32 : i32
    %9 = arith.extui %8 : i1 to i32
    %c0_i32_6 = arith.constant 0 : i32
    %10 = arith.cmpi ne, %9, %c0_i32_6 : i32
    scf.if %10 {
      %cst_14 = arith.constant 0.000000e+00 : f32
      %19 = vector.broadcast %cst_14 : f32 to vector<32x1xf32>
      %c0_15 = arith.constant 0 : index
      %c0_16 = arith.constant 0 : index
      %c0_17 = arith.constant 0 : index
      %20 = vector.load %arg5[%c0_15, %c0_16, %c0_17] : memref<1x32x1xf32, #tpu.memory_space<vmem>>, vector<1x32x1xf32>
      %21 = vector.shape_cast %20 : vector<1x32x1xf32> to vector<32x1xf32>
      %22 = vector.shape_cast %19 : vector<32x1xf32> to vector<1x32x1xf32>
      tpu.vector_store %arg5[%c0_15, %c0_16, %c0_17], %22 {strides = array<i32>} : memref<1x32x1xf32, #tpu.memory_space<vmem>>, vector<1x32x1xf32>,
    } else {
    }
    %c0_7 = arith.constant 0 : index
    %c0_8 = arith.constant 0 : index
    %c0_9 = arith.constant 0 : index
    %11 = vector.load %arg5[%c0_7, %c0_8, %c0_9] : memref<1x32x1xf32, #tpu.memory_space<vmem>>, vector<1x32x1xf32>
    %12 = vector.shape_cast %11 : vector<1x32x1xf32> to vector<32x1xf32>
    %cst_10 = arith.constant dense<0.000000e+00> : vector<32xf32>
    %13 = vector.multi_reduction <add>, %7, %cst_10 [1] : vector<32x200xf32> to vector<32xf32>
    %14 = vector.shape_cast %13 : vector<32xf32> to vector<32x1xf32>
    %15 = arith.addf %12, %14 : vector<32x1xf32>
    %c0_11 = arith.constant 0 : index
    %c0_12 = arith.constant 0 : index
    %c0_13 = arith.constant 0 : index
    %16 = vector.load %arg5[%c0_11, %c0_12, %c0_13] : memref<1x32x1xf32, #tpu.memory_space<vmem>>, vector<1x32x1xf32>
    %17 = vector.shape_cast %16 : vector<1x32x1xf32> to vector<32x1xf32>
    %18 = vector.shape_cast %15 : vector<32x1xf32> to vector<1x32x1xf32>
    tpu.vector_store %arg5[%c0_11, %c0_12, %c0_13], %18 {strides = array<i32>} : memref<1x32x1xf32, #tpu.memory_space<vmem>>, vector<1x32x1xf32>,
    return
  }
  func.func @transform_0(%arg0: i32, %arg1: i32) -> (i32, i32, i32) {
    %c0_i32 = arith.constant 0 : i32
    %c0_i32_0 = arith.constant 0 : i32
    return %arg0, %arg1, %c0_i32 : i32, i32, i32
  }
  func.func @transform_1(%arg0: i32, %arg1: i32) -> (i32, i32) {
    %c0_i32 = arith.constant 0 : i32
    %c0_i32_0 = arith.constant 0 : i32
    %c0_i32_1 = arith.constant 0 : i32
    return %c0_i32, %c0_i32_0 : i32, i32
  }
  func.func @transform_2(%arg0: i32, %arg1: i32) -> (i32, i32) {
    %c0_i32 = arith.constant 0 : i32
    %c0_i32_0 = arith.constant 0 : i32
    %c0_i32_1 = arith.constant 0 : i32
    return %c0_i32, %c0_i32_0 : i32, i32
  }
  func.func @transform_3(%arg0: i32, %arg1: i32) -> (i32, i32, i32) {
    %c0_i32 = arith.constant 0 : i32
    %c0_i32_0 = arith.constant 0 : i32
    %c0_i32_1 = arith.constant 0 : i32
    return %arg0, %c0_i32, %c0_i32_0 : i32, i32, i32
  }
}

module attributes {stable_mosaic.version = 11 : i64} {
  func.func @_mix_kernel(%arg0: i32, %arg1: i32, %arg2: memref<4xf32, #tpu.memory_space<smem>>, %arg3: memref<1x50x128xf32, #tpu.memory_space<vmem>>, %arg4: memref<50x128xf32, #tpu.memory_space<vmem>>) attributes {dimension_semantics = [#tpu.dimension_semantics<parallel>, #tpu.dimension_semantics<arbitrary>], iteration_bounds = array<i64: 1, 4>, scalar_prefetch = 0 : i64, scratch_operands = 0 : i64, tpu.core_type = #tpu.core_type<tc>, window_params = [{transform_indices = @transform_0, window_bounds = array<i64: 4>}, {transform_indices = @transform_1, window_bounds = array<i64: 1, 50, 128>}, {transform_indices = @transform_2, window_bounds = array<i64: 50, 128>}]} {
    %c0_i32 = arith.constant 0 : i32
    %0 = arith.cmpi eq, %arg1, %c0_i32 : i32
    %1 = arith.extui %0 : i1 to i32
    %c0_i32_0 = arith.constant 0 : i32
    %2 = arith.cmpi ne, %1, %c0_i32_0 : i32
    scf.if %2 {
      %cst = arith.constant 0.000000e+00 : f32
      %12 = vector.broadcast %cst : f32 to vector<50x128xf32>
      %c0_7 = arith.constant 0 : index
      %c0_8 = arith.constant 0 : index
      %13 = vector.load %arg4[%c0_7, %c0_8] : memref<50x128xf32, #tpu.memory_space<vmem>>, vector<50x128xf32>
      tpu.vector_store %arg4[%c0_7, %c0_8], %12 {strides = array<i32>} : memref<50x128xf32, #tpu.memory_space<vmem>>, vector<50x128xf32>,
    } else {
    }
    %c0 = arith.constant 0 : index
    %c0_1 = arith.constant 0 : index
    %3 = vector.load %arg4[%c0, %c0_1] : memref<50x128xf32, #tpu.memory_space<vmem>>, vector<50x128xf32>
    %4 = arith.index_cast %arg1 : i32 to index
    %5 = memref.load %arg2[%4] : memref<4xf32, #tpu.memory_space<smem>>
    %c0_2 = arith.constant 0 : index
    %c0_3 = arith.constant 0 : index
    %c0_4 = arith.constant 0 : index
    %6 = vector.load %arg3[%c0_2, %c0_3, %c0_4] : memref<1x50x128xf32, #tpu.memory_space<vmem>>, vector<1x50x128xf32>
    %7 = vector.shape_cast %6 : vector<1x50x128xf32> to vector<50x128xf32>
    %8 = vector.broadcast %5 : f32 to vector<50x128xf32>
    %9 = arith.mulf %8, %7 : vector<50x128xf32>
    %10 = arith.addf %3, %9 : vector<50x128xf32>
    %c0_5 = arith.constant 0 : index
    %c0_6 = arith.constant 0 : index
    %11 = vector.load %arg4[%c0_5, %c0_6] : memref<50x128xf32, #tpu.memory_space<vmem>>, vector<50x128xf32>
    tpu.vector_store %arg4[%c0_5, %c0_6], %10 {strides = array<i32>} : memref<50x128xf32, #tpu.memory_space<vmem>>, vector<50x128xf32>,
    return
  }
  func.func @transform_0(%arg0: i32, %arg1: i32) -> i32 {
    %c0_i32 = arith.constant 0 : i32
    %c0_i32_0 = arith.constant 0 : i32
    return %c0_i32 : i32
  }
  func.func @transform_1(%arg0: i32, %arg1: i32) -> (i32, i32, i32) {
    %c0_i32 = arith.constant 0 : i32
    %c0_i32_0 = arith.constant 0 : i32
    return %arg1, %arg0, %c0_i32 : i32, i32, i32
  }
  func.func @transform_2(%arg0: i32, %arg1: i32) -> (i32, i32) {
    %c0_i32 = arith.constant 0 : i32
    %c0_i32_0 = arith.constant 0 : i32
    return %arg0, %c0_i32 : i32, i32
  }
}

</mosaic_0001>

<llo_original>
// kernel: attention_forward.3
$region0: #{attention_forward.3}
  #allocation0 [shape = 'u32[]', space=smem, size = 0x4, offset = 0x4, fixed_abs, tag = 'smem constant byte address 0x4 - core index']
  #allocation1 [shape = 'u32[72,128]{1,0:T(1,128)}', space=vmem, size = 0x9000, scoped, tag = 'internal scratch']
  %s0 = inlined_call_operand.vmem [shape: f32[4], index: 0, kind: input, shape index: {}]
  %s1 = inlined_call_operand.vmem [shape: f32[4,50,128], index: 1, kind: input, shape index: {}]
  %s2 = inlined_call_operand.vmem [shape: f32[50,128], index: 2, kind: output, shape index: {}]
  %s3 = sld [smem:[#allocation0]]
  $region49: #{attention_forward.3} parent=0
    _
  %s5 = ssub.s32 1, %s3
  %s6 = scalar_select 0, %s5, %s3
  $region1: #{attention_forward.3} parent=0
    #allocation2 [shape = 'u8[512]{0}', space=smem, size = 0x200, scoped, tag = 'input window, operand 0, single buffered']
    #allocation3 [shape = 's32[2]{0}', space=sflag, size = 0x8, scoped, tag = 'scoped memory for attention_forward.3']
    %7 = vsyncpa [#allocation3], 0
    loop: start=0, step=1, limit=6
    $region2: #{attention_forward.3} parent=1 // loop_pre_header
      _
    $region3: #{attention_forward.3} parent=1 // loop_header
      %s9 = sphi 0, %s13
      %p10 = scmp.ge.s32.totalorder %s9, 6
      %s16 = sphi 0, %s28
      %s17 = sphi 0, %s24
      %s18 = sphi 0, %s16
      %s19 = sphi 0, %s17
      %s20 = sphi 0, %s18
      %s21 = sphi 0, %s19
      %s29 = sphi 0, %s29
      %s31 = sphi 0, %s29
      %s32 = sphi 0, %s31
      %s46 = sphi 0, %s32
      %s54 = sphi 0, %s56
      %s57 = sphi 0, %s54
      %s58 = sphi 0, %s57
      %s74 = sphi 0, %s58
      %s80 = sphi 0, %s82
      %s83 = sphi 0, %s80
      %s84 = sphi 0, %s83
      %s100 = sphi 0, %s84
    $region4: #{attention_forward.3} parent=1 // loop_header_branch
      %12 = sbr.rel (%p10) target = $region8
    $region5: #{attention_forward.3} parent=1 // loop_body
      %s14 = ssub.s32 %s9, 1
      %s15 = ssub.s32 %s9, 2
      %s22 = sadd.s32 1, %s17
      %p23 = scmp.ge.s32.totalorder %s22, 4
      %s24 = scalar_select %p23, 0, %s22
      %s25 = sadd.s32 1, %s16
      %s26 = scalar_select %p23, %s25, %s16
      %p27 = scmp.ge.s32.totalorder %s26, 1
      %s28 = scalar_select %p27, 0, %s26
      %s30 = sadd.s32 %s29, 1
      %p33 = scmp.eq.s32.totalorder %s9, 3
      %p34 = scmp.ne.s32.totalorder %s29, %s31
      %p35 = scmp.eq.s32.totalorder %s9, 0
      %p36 = por %p34, %p35
      %p37 = scmp.ne.s32.totalorder %s29, %s31
      %p38 = scmp.eq.s32.totalorder %s14, 3
      %p39 = por %p37, %p38
      %p40 = scmp.ne.s32.totalorder %s31, %s32
      %p41 = scmp.eq.s32.totalorder %s14, 0
      %p42 = por %p40, %p41
      %p43 = scmp.ne.s32.totalorder %s31, %s32
      %p44 = scmp.eq.s32.totalorder %s15, 3
      %p45 = por %p43, %p44
      %p47 = scmp.ne.s32.totalorder %s32, %s46
      %p48 = scmp.eq.s32.totalorder %s15, 0
      %p49 = por %p47, %p48
      %s50 = ssub.s32 %s17, %s24
      %s51 = ssub.s32 %s16, %s28
      %s52 = sor.u32 %s50, %s51
      %p53 = scmp.eq.s32.totalorder %s52, 0
      %s55 = sadd.s32 %s54, 1
      %s56 = scalar_select %p53, %s54, %s55
      %p59 = pneg %p53
      %p60 = scmp.eq.s32.totalorder %s9, 3
      %p61 = por %p59, %p60
      %p62 = scmp.ne.s32.totalorder %s54, %s57
      %p63 = scmp.eq.s32.totalorder %s9, 0
      %p64 = por %p62, %p63
      %p65 = scmp.ne.s32.totalorder %s54, %s57
      %p66 = scmp.eq.s32.totalorder %s14, 3
      %p67 = por %p65, %p66
      %p68 = scmp.ne.s32.totalorder %s57, %s58
      %p69 = scmp.eq.s32.totalorder %s14, 0
      %p70 = por %p68, %p69
      %p71 = scmp.ne.s32.totalorder %s57, %s58
      %p72 = scmp.eq.s32.totalorder %s15, 3
      %p73 = por %p71, %p72
      %p75 = scmp.ne.s32.totalorder %s58, %s74
      %p76 = scmp.eq.s32.totalorder %s15, 0
      %p77 = por %p75, %p76
      %s78 = ssub.s32 %s16, %s28
      %p79 = scmp.eq.s32.totalorder %s78, 0
      %s81 = sadd.s32 %s80, 1
      %s82 = scalar_select %p79, %s80, %s81
      %p85 = pneg %p79
      %p86 = scmp.eq.s32.totalorder %s9, 3
      %p87 = por %p85, %p86
      %p88 = scmp.ne.s32.totalorder %s80, %s83
      %p89 = scmp.eq.s32.totalorder %s9, 0
      %p90 = por %p88, %p89
      %p91 = scmp.ne.s32.totalorder %s80, %s83
      %p92 = scmp.eq.s32.totalorder %s14, 3
      %p93 = por %p91, %p92
      %p94 = scmp.ne.s32.totalorder %s83, %s84
      %p95 = scmp.eq.s32.totalorder %s14, 0
      %p96 = por %p94, %p95
      %p97 = scmp.ne.s32.totalorder %s83, %s84
      %p98 = scmp.eq.s32.totalorder %s15, 3
      %p99 = por %p97, %p98
      %p101 = scmp.ne.s32.totalorder %s84, %s100
      %p102 = scmp.eq.s32.totalorder %s15, 0
      %p103 = por %p101, %p102
      %p104 = scmp.le.s32.totalorder 1, %s9
      %p105 = scmp.lt.s32.totalorder %s9, 5
      %p106 = pnand %p104, %p105
      %p107 = pneg %p106
      // Predicated region
      $region9: #{attention_forward.3} parent=5 // pred_check
        _
      $region10: #{attention_forward.3} parent=5 // pred_check_branch
        %109 = sbr.rel (%p106) target = $region12
      $region11: #{attention_forward.3} parent=5 // pred_region
        %s110 = ssub.s32 %s9, 1
        // Predicated region
        $region13: #{attention_forward.3} parent=11 // pred_check
          %p111 = pneg %p42
        $region14: #{attention_forward.3} parent=11 // pred_check_branch
          %113 = sbr.rel (%p111) target = $region16
        $region15: #{attention_forward.3} parent=11 // pred_region
          %115 = vsyncadd [#allocation3], 0
          %s117 = sshll.u32 %s0, 4
          %s118 = int_to_ptr.vmem [resolvable:$true] %s117
          %120 = dma.vmem_to_smem %s118, 16, [#allocation2], [#allocation3]
        $region16: #{attention_forward.3} parent=11 // pred_fallthru
          _
      $region12: #{attention_forward.3} parent=5 // pred_fallthru
        _
      %p121 = scmp.lt.s32.totalorder %s9, 4
      // Predicated region
      $region17: #{attention_forward.3} parent=5 // pred_check
        %p122 = pneg %p121
      $region18: #{attention_forward.3} parent=5 // pred_check_branch
        %124 = sbr.rel (%p122) target = $region20
      $region19: #{attention_forward.3} parent=5 // pred_region
        // Predicated region
        $region21: #{attention_forward.3} parent=19 // pred_check
          %p125 = pneg %p64
        $region22: #{attention_forward.3} parent=19 // pred_check_branch
          %127 = sbr.rel (%p125) target = $region24
        $region23: #{attention_forward.3} parent=19 // pred_region
          %s128 = smul.u32 7, %s16
          %p129 = scmp.lt.s32.totalorder %s17, 3
          %s130 = scalar_select %p129, %s17, 3
          %p131 = scmp.lt.s32.totalorder %s128, 6
          %s132 = scalar_select %p131, %s128, 6
          %s133 = smul.addr %s130, 7
          %s134 = sadd.s32 %s132, %s133
          %s135 = smul.addr %s134, 8
          %s136 = scalar_lea.vmem %s1, %s135
          %s137 = smul.u32 7, %s16
        $region24: #{attention_forward.3} parent=19 // pred_fallthru
          _
      $region20: #{attention_forward.3} parent=5 // pred_fallthru
        _
      %p138 = scmp.le.s32.totalorder 1, %s9
      %p139 = scmp.lt.s32.totalorder %s9, 5
      %p140 = pnand %p138, %p139
      %p141 = pneg %p140
      // Predicated region
      $region25: #{attention_forward.3} parent=5 // pred_check
        _
      $region26: #{attention_forward.3} parent=5 // pred_check_branch
        %143 = sbr.rel (%p140) target = $region28
      $region27: #{attention_forward.3} parent=5 // pred_region
        %s144 = ssub.s32 %s9, 1
        // Predicated region
        $region29: #{attention_forward.3} parent=27 // pred_check
          %p145 = pneg %p42
        $region30: #{attention_forward.3} parent=27 // pred_check_branch
          %147 = sbr.rel (%p145) target = $region32
        $region31: #{attention_forward.3} parent=27 // pred_region
          %149 = dma.done [#allocation3], 16
        $region32: #{attention_forward.3} parent=27 // pred_fallthru
          _
        %150 = sfence
        %p151 = pneg %p42
        %p152 = pneg %p39
        %s153 = smul.u32 7, %s18
        %p154 = scmp.lt.s32.totalorder %s19, 3
        %s155 = scalar_select %p154, %s19, 3
        %p156 = scmp.lt.s32.totalorder %s153, 6
        %s157 = scalar_select %p156, %s153, 6
        %s158 = smul.addr %s155, 7
        %s159 = sadd.s32 %s157, %s158
        %s160 = smul.addr %s159, 8
        %s161 = scalar_lea.vmem %s1, %s160
        %p162 = pneg %p70
        %p163 = pneg %p67
        %p164 = pneg %p96
        %p165 = pneg %p93
        %s166 = smul.u32 7, %s18
        %p167 = scmp.lt.s32.totalorder %s166, 6
        %s168 = scalar_select %p167, %s166, 6
        %s169 = smul.addr %s168, 8
        %s170 = scalar_lea.vmem %s2, %s169
        %s171 = smul.u32 7, %s18
        %p172 = scmp.lt.s32.totalorder %s19, 3
        %s173 = scalar_select %p172, %s19, 3
        %p174 = scmp.lt.s32.totalorder %s171, 6
        %s175 = scalar_select %p174, %s171, 6
        %s176 = smul.addr %s173, 7
        %s177 = sadd.s32 %s175, %s176
        %s178 = smul.addr %s177, 8
        %s179 = scalar_lea.vmem %s1, %s178
        %s180 = smul.u32 7, %s18
        %s181 = smul.u32 7, %s18
        %p182 = scmp.lt.s32.totalorder %s181, 6
        %s183 = scalar_select %p182, %s181, 6
        %s184 = smul.addr %s183, 8
        %s185 = scalar_lea.vmem %s2, %s184
        %s186 = smul.u32 7, %s18
        %p187 = scmp.eq.s32.totalorder %s19, 0
        // Predicated region
        $region33: #{attention_forward.3} parent=27 // pred_check
          %p188 = pneg %p187
        $region34: #{attention_forward.3} parent=27 // pred_check_branch
          %190 = sbr.rel (%p188) target = $region36
        $region35: #{attention_forward.3} parent=27 // pred_region
          %191 = vst [vmem:[%s185] sm:$0xff] 0.0
          %192 = vst [vmem:[%s185 + $0x8] sm:$0xff] 0.0
          %193 = vst [vmem:[%s185 + $0x10] sm:$0xff] 0.0
          %194 = vst [vmem:[%s185 + $0x18] sm:$0xff] 0.0
          %195 = vst [vmem:[%s185 + $0x20] sm:$0xff] 0.0
          %196 = vst [vmem:[%s185 + $0x28] sm:$0xff] 0.0
          %197 = vst [vmem:[%s185 + $0x30] sm:$0x3] 0.0
        $region36: #{attention_forward.3} parent=27 // pred_fallthru
          _
        %v198 = vld [vmem:[%s185] sm:$0xff]
        %v199 = vld [vmem:[%s185 + $0x8] sm:$0xff]
        %v200 = vld [vmem:[%s185 + $0x10] sm:$0xff]
        %v201 = vld [vmem:[%s185 + $0x18] sm:$0xff]
        %v202 = vld [vmem:[%s185 + $0x20] sm:$0xff]
        %v203 = vld [vmem:[%s185 + $0x28] sm:$0xff]
        %v204 = vld [vmem:[%s185 + $0x30] sm:$0x3]
        %s205 = sld [smem:[#allocation2 + %s19]]
        %v206 = vld [vmem:[%s179] sm:$0xff]
        %v207 = vld [vmem:[%s179 + $0x8] sm:$0xff]
        %v208 = vld [vmem:[%s179 + $0x10] sm:$0xff]
        %v209 = vld [vmem:[%s179 + $0x18] sm:$0xff]
        %v210 = vld [vmem:[%s179 + $0x20] sm:$0xff]
        %v211 = vld [vmem:[%s179 + $0x28] sm:$0xff]
        %v212 = vld [vmem:[%s179 + $0x30] sm:$0x3]
        %v213 = vstv %s205
        %v214 = vmul.f32 %v213, %v206
        %v215 = vmul.f32 %v213, %v207
        %v216 = vmul.f32 %v213, %v208
        %v217 = vmul.f32 %v213, %v209
        %v218 = vmul.f32 %v213, %v210
        %v219 = vmul.f32 %v213, %v211
        %v220 = vmul.f32 %v213, %v212
        %v221 = vadd.f32 %v198, %v214
        %v222 = vadd.f32 %v199, %v215
        %v223 = vadd.f32 %v200, %v216
        %v224 = vadd.f32 %v201, %v217
        %v225 = vadd.f32 %v202, %v218
        %v226 = vadd.f32 %v203, %v219
        %v227 = vadd.f32 %v204, %v220
        %228 = vst [vmem:[%s185] sm:$0xff] %v221
        %229 = vst [vmem:[%s185 + $0x8] sm:$0xff] %v222
        %230 = vst [vmem:[%s185 + $0x10] sm:$0xff] %v223
        %231 = vst [vmem:[%s185 + $0x18] sm:$0xff] %v224
        %232 = vst [vmem:[%s185 + $0x20] sm:$0xff] %v225
        %233 = vst [vmem:[%s185 + $0x28] sm:$0xff] %v226
        %234 = vst [vmem:[%s185 + $0x30] sm:$0x3] %v227
        %s235 = smul.u32 7, %s18
        %p236 = scmp.lt.s32.totalorder %s235, 6
        %s237 = scalar_select %p236, %s235, 6
        %s238 = smul.addr %s237, 8
        %s239 = scalar_lea.vmem %s2, %s238
        // Predicated region
        $region37: #{attention_forward.3} parent=27 // pred_check
          %p240 = pneg %p93
        $region38: #{attention_forward.3} parent=27 // pred_check_branch
          %242 = sbr.rel (%p240) target = $region40
        $region39: #{attention_forward.3} parent=27 // pred_region
          %s243 = smul.u32 7, %s18
        $region40: #{attention_forward.3} parent=27 // pred_fallthru
          _
        // Predicated region
        $region41: #{attention_forward.3} parent=27 // pred_check
          %p244 = pneg %p93
        $region42: #{attention_forward.3} parent=27 // pred_check_branch
          %246 = sbr.rel (%p244) target = $region44
        $region43: #{attention_forward.3} parent=27 // pred_region
          %s247 = smul.u32 7, %s18
          %p248 = scmp.lt.s32.totalorder %s247, 6
          %s249 = scalar_select %p248, %s247, 6
          %s250 = smul.addr %s249, 8
          %s251 = scalar_lea.vmem %s2, %s250
        $region44: #{attention_forward.3} parent=27 // pred_fallthru
          _
      $region28: #{attention_forward.3} parent=5 // pred_fallthru
        _
      %p252 = scmp.le.s32.totalorder 2, %s9
      // Predicated region
      $region45: #{attention_forward.3} parent=5 // pred_check
        %p253 = pneg %p252
      $region46: #{attention_forward.3} parent=5 // pred_check_branch
        %255 = sbr.rel (%p253) target = $region48
      $region47: #{attention_forward.3} parent=5 // pred_region
        %s256 = ssub.s32 %s9, 2
      $region48: #{attention_forward.3} parent=5 // pred_fallthru
        _
    $region6: #{attention_forward.3} parent=1 // loop_footer
      %s13 = sadd.s32 1, %s9
    $region7: #{attention_forward.3} parent=1 // loop_footer_branch
      %8 = sbr.rel target = $region3
    $region8: #{attention_forward.3} parent=1 // loop_exit
      _
    %257 = vsyncpa [#allocation3], 1
    %s258 = scalar_lea.sflag [#allocation3], 1
    %259 = vsyncpa %s258, 1

// kernel: attention_forward.2
$region0: #{attention_forward.2}
  #allocation0 [shape = 'u32[]', space=smem, size = 0x4, offset = 0x4, fixed_abs, tag = 'smem constant byte address 0x4 - core index']
  #allocation1 [shape = 'u32[72,128]{1,0:T(1,128)}', space=vmem, size = 0x9000, scoped, tag = 'internal scratch']
  %s0 = inlined_call_operand.vmem [shape: f32[4,200,32], index: 0, kind: input, shape index: {}]
  %s1 = inlined_call_operand.vmem [shape: f32[32,32], index: 1, kind: input, shape index: {}]
  %s2 = inlined_call_operand.vmem [shape: f32[32,1], index: 2, kind: input, shape index: {}]
  %s3 = inlined_call_operand.vmem [shape: f32[4,32,1], index: 3, kind: output, shape index: {}]
  %s4 = sld [smem:[#allocation0]]
  $region49: #{attention_forward.2} parent=0
    _
  %s6 = ssub.s32 1, %s4
  %s7 = scalar_select 0, %s6, %s4
  loop: start=0, step=1, limit=6
  $region2: #{attention_forward.2} parent=0 // loop_pre_header
    _
  $region3: #{attention_forward.2} parent=0 // loop_header
    %s9 = sphi 0, %s13
    %p10 = scmp.ge.s32.totalorder %s9, 6
    %s16 = sphi 0, %s28
    %s17 = sphi 0, %s24
    %s18 = sphi 0, %s16
    %s19 = sphi 0, %s17
    %s20 = sphi 0, %s18
    %s21 = sphi 0, %s19
    %s33 = sphi 0, %s35
    %s36 = sphi 0, %s33
    %s37 = sphi 0, %s36
    %s53 = sphi 0, %s37
    %s57 = sphi 0, %s57
    %s59 = sphi 0, %s57
    %s60 = sphi 0, %s59
    %s74 = sphi 0, %s60
    %s78 = sphi 0, %s78
    %s80 = sphi 0, %s78
    %s81 = sphi 0, %s80
    %s95 = sphi 0, %s81
    %s101 = sphi 0, %s103
    %s104 = sphi 0, %s101
    %s105 = sphi 0, %s104
    %s121 = sphi 0, %s105
  $region4: #{attention_forward.2} parent=0 // loop_header_branch
    %12 = sbr.rel (%p10) target = $region8
  $region5: #{attention_forward.2} parent=0 // loop_body
    %s14 = ssub.s32 %s9, 1
    %s15 = ssub.s32 %s9, 2
    %s22 = sadd.s32 1, %s17
    %p23 = scmp.ge.s32.totalorder %s22, 1
    %s24 = scalar_select %p23, 0, %s22
    %s25 = sadd.s32 1, %s16
    %s26 = scalar_select %p23, %s25, %s16
    %p27 = scmp.ge.s32.totalorder %s26, 4
    %s28 = scalar_select %p27, 0, %s26
    %s29 = ssub.s32 %s16, %s28
    %s30 = ssub.s32 %s17, %s24
    %s31 = sor.u32 %s29, %s30
    %p32 = scmp.eq.s32.totalorder %s31, 0
    %s34 = sadd.s32 %s33, 1
    %s35 = scalar_select %p32, %s33, %s34
    %p38 = pneg %p32
    %p39 = scmp.eq.s32.totalorder %s9, 3
    %p40 = por %p38, %p39
    %p41 = scmp.ne.s32.totalorder %s33, %s36
    %p42 = scmp.eq.s32.totalorder %s9, 0
    %p43 = por %p41, %p42
    %p44 = scmp.ne.s32.totalorder %s33, %s36
    %p45 = scmp.eq.s32.totalorder %s14, 3
    %p46 = por %p44, %p45
    %p47 = scmp.ne.s32.totalorder %s36, %s37
    %p48 = scmp.eq.s32.totalorder %s14, 0
    %p49 = por %p47, %p48
    %p50 = scmp.ne.s32.totalorder %s36, %s37
    %p51 = scmp.eq.s32.totalorder %s15, 3
    %p52 = por %p50, %p51
    %p54 = scmp.ne.s32.totalorder %s37, %s53
    %p55 = scmp.eq.s32.totalorder %s15, 0
    %p56 = por %p54, %p55
    %s58 = sadd.s32 %s57, 1
    %p61 = scmp.eq.s32.totalorder %s9, 3
    %p62 = scmp.ne.s32.totalorder %s57, %s59
    %p63 = scmp.eq.s32.totalorder %s9, 0
    %p64 = por %p62, %p63
    %p65 = scmp.ne.s32.totalorder %s57, %s59
    %p66 = scmp.eq.s32.totalorder %s14, 3
    %p67 = por %p65, %p66
    %p68 = scmp.ne.s32.totalorder %s59, %s60
    %p69 = scmp.eq.s32.totalorder %s14, 0
    %p70 = por %p68, %p69
    %p71 = scmp.ne.s32.totalorder %s59, %s60
    %p72 = scmp.eq.s32.totalorder %s15, 3
    %p73 = por %p71, %p72
    %p75 = scmp.ne.s32.totalorder %s60, %s74
    %p76 = scmp.eq.s32.totalorder %s15, 0
    %p77 = por %p75, %p76
    %s79 = sadd.s32 %s78, 1
    %p82 = scmp.eq.s32.totalorder %s9, 3
    %p83 = scmp.ne.s32.totalorder %s78, %s80
    %p84 = scmp.eq.s32.totalorder %s9, 0
    %p85 = por %p83, %p84
    %p86 = scmp.ne.s32.totalorder %s78, %s80
    %p87 = scmp.eq.s32.totalorder %s14, 3
    %p88 = por %p86, %p87
    %p89 = scmp.ne.s32.totalorder %s80, %s81
    %p90 = scmp.eq.s32.totalorder %s14, 0
    %p91 = por %p89, %p90
    %p92 = scmp.ne.s32.totalorder %s80, %s81
    %p93 = scmp.eq.s32.totalorder %s15, 3
    %p94 = por %p92, %p93
    %p96 = scmp.ne.s32.totalorder %s81, %s95
    %p97 = scmp.eq.s32.totalorder %s15, 0
    %p98 = por %p96, %p97
    %s99 = ssub.s32 %s16, %s28
    %p100 = scmp.eq.s32.totalorder %s99, 0
    %s102 = sadd.s32 %s101, 1
    %s103 = scalar_select %p100, %s101, %s102
    %p106 = pneg %p100
    %p107 = scmp.eq.s32.totalorder %s9, 3
    %p108 = por %p106, %p107
    %p109 = scmp.ne.s32.totalorder %s101, %s104
    %p110 = scmp.eq.s32.totalorder %s9, 0
    %p111 = por %p109, %p110
    %p112 = scmp.ne.s32.totalorder %s101, %s104
    %p113 = scmp.eq.s32.totalorder %s14, 3
    %p114 = por %p112, %p113
    %p115 = scmp.ne.s32.totalorder %s104, %s105
    %p116 = scmp.eq.s32.totalorder %s14, 0
    %p117 = por %p115, %p116
    %p118 = scmp.ne.s32.totalorder %s104, %s105
    %p119 = scmp.eq.s32.totalorder %s15, 3
    %p120 = por %p118, %p119
    %p122 = scmp.ne.s32.totalorder %s105, %s121
    %p123 = scmp.eq.s32.totalorder %s15, 0
    %p124 = por %p122, %p123
    %p125 = scmp.le.s32.totalorder 1, %s9
    %p126 = scmp.lt.s32.totalorder %s9, 5
    %p127 = pnand %p125, %p126
    %p128 = pneg %p127
    // Predicated region
    $region9: #{attention_forward.2} parent=5 // pred_check
      _
    $region10: #{attention_forward.2} parent=5 // pred_check_branch
      %130 = sbr.rel (%p127) target = $region12
    $region11: #{attention_forward.2} parent=5 // pred_region
      %s131 = ssub.s32 %s9, 1
      // Predicated region
      $region13: #{attention_forward.2} parent=11 // pred_check
        %p132 = pneg %p70
      $region14: #{attention_forward.2} parent=11 // pred_check_branch
        %134 = sbr.rel (%p132) target = $region16
      $region15: #{attention_forward.2} parent=11 // pred_region
        _
      $region16: #{attention_forward.2} parent=11 // pred_fallthru
        _
      // Predicated region
      $region17: #{attention_forward.2} parent=11 // pred_check
        %p135 = pneg %p91
      $region18: #{attention_forward.2} parent=11 // pred_check_branch
        %137 = sbr.rel (%p135) target = $region20
      $region19: #{attention_forward.2} parent=11 // pred_region
        _
      $region20: #{attention_forward.2} parent=11 // pred_fallthru
        _
    $region12: #{attention_forward.2} parent=5 // pred_fallthru
      _
    %p138 = scmp.lt.s32.totalorder %s9, 4
    // Predicated region
    $region21: #{attention_forward.2} parent=5 // pred_check
      %p139 = pneg %p138
    $region22: #{attention_forward.2} parent=5 // pred_check_branch
      %141 = sbr.rel (%p139) target = $region24
    $region23: #{attention_forward.2} parent=5 // pred_region
      // Predicated region
      $region25: #{attention_forward.2} parent=23 // pred_check
        %p142 = pneg %p43
      $region26: #{attention_forward.2} parent=23 // pred_check_branch
        %144 = sbr.rel (%p142) target = $region28
      $region27: #{attention_forward.2} parent=23 // pred_region
        %s145 = smul.u32 25, %s17
        %p146 = scmp.lt.s32.totalorder %s16, 3
        %s147 = scalar_select %p146, %s16, 3
        %p148 = scmp.lt.s32.totalorder %s145, 24
        %s149 = scalar_select %p148, %s145, 24
        %s150 = smul.addr %s147, 25
        %s151 = sadd.s32 %s149, %s150
        %s152 = smul.addr %s151, 8
        %s153 = scalar_lea.vmem %s0, %s152
        %s154 = smul.u32 25, %s17
      $region28: #{attention_forward.2} parent=23 // pred_fallthru
        _
    $region24: #{attention_forward.2} parent=5 // pred_fallthru
      _
    %p155 = scmp.le.s32.totalorder 1, %s9
    %p156 = scmp.lt.s32.totalorder %s9, 5
    %p157 = pnand %p155, %p156
    %p158 = pneg %p157
    // Predicated region
    $region29: #{attention_forward.2} parent=5 // pred_check
      _
    $region30: #{attention_forward.2} parent=5 // pred_check_branch
      %160 = sbr.rel (%p157) target = $region32
    $region31: #{attention_forward.2} parent=5 // pred_region
      %s161 = ssub.s32 %s9, 1
      %s162 = smul.u32 25, %s19
      %p163 = scmp.lt.s32.totalorder %s18, 3
      %s164 = scalar_select %p163, %s18, 3
      %p165 = scmp.lt.s32.totalorder %s162, 24
      %s166 = scalar_select %p165, %s162, 24
      %s167 = smul.addr %s164, 25
      %s168 = sadd.s32 %s166, %s167
      %s169 = smul.addr %s168, 8
      %s170 = scalar_lea.vmem %s0, %s169
      %p171 = pneg %p49
      %p172 = pneg %p46
      %p173 = pneg %p70
      %p174 = pneg %p67
      %p175 = pneg %p91
      %p176 = pneg %p88
      %p177 = pneg %p117
      %p178 = pneg %p114
      %p179 = scmp.lt.s32.totalorder %s18, 3
      %s180 = scalar_select %p179, %s18, 3
      %s181 = smul.addr %s180, 4
      %s182 = smul.addr %s181, 8
      %s183 = scalar_lea.vmem %s3, %s182
      %s184 = smul.u32 25, %s19
      %p185 = scmp.lt.s32.totalorder %s18, 3
      %s186 = scalar_select %p185, %s18, 3
      %p187 = scmp.lt.s32.totalorder %s184, 24
      %s188 = scalar_select %p187, %s184, 24
      %s189 = smul.addr %s186, 25
      %s190 = sadd.s32 %s188, %s189
      %s191 = smul.addr %s190, 8
      %s192 = scalar_lea.vmem %s0, %s191
      %s193 = smul.u32 25, %s19
      %p194 = scmp.lt.s32.totalorder %s18, 3
      %s195 = scalar_select %p194, %s18, 3
      %s196 = smul.addr %s195, 4
      %s197 = smul.addr %s196, 8
      %s198 = scalar_lea.vmem %s3, %s197
      %v199 = vld [vmem:[%s1] sm:$0xff]
      %v200 = vld [vmem:[%s1 + $0x8] sm:$0xff]
      %v201 = vld [vmem:[%s1 + $0x10] sm:$0xff]
      %v202 = vld [vmem:[%s1 + $0x18] sm:$0xff]
      %v203 = vld [vmem:[%s192] sm:$0xff]
      %v204 = vld [vmem:[%s192 + $0x8] sm:$0xff]
      %v205 = vld [vmem:[%s192 + $0x10] sm:$0xff]
      %v206 = vld [vmem:[%s192 + $0x18] sm:$0xff]
      %v207 = vld [vmem:[%s192 + $0x20] sm:$0xff]
      %v208 = vld [vmem:[%s192 + $0x28] sm:$0xff]
      %v209 = vld [vmem:[%s192 + $0x30] sm:$0xff]
      %v210 = vld [vmem:[%s192 + $0x38] sm:$0xff]
      %v211 = vld [vmem:[%s192 + $0x40] sm:$0xff]
      %v212 = vld [vmem:[%s192 + $0x48] sm:$0xff]
      %v213 = vld [vmem:[%s192 + $0x50] sm:$0xff]
      %v214 = vld [vmem:[%s192 + $0x58] sm:$0xff]
      %v215 = vld [vmem:[%s192 + $0x60] sm:$0xff]
      %v216 = vld [vmem:[%s192 + $0x68] sm:$0xff]
      %v217 = vld [vmem:[%s192 + $0x70] sm:$0xff]
      %v218 = vld [vmem:[%s192 + $0x78] sm:$0xff]
      %v219 = vld [vmem:[%s192 + $0x80] sm:$0xff]
      %v220 = vld [vmem:[%s192 + $0x88] sm:$0xff]
      %v221 = vld [vmem:[%s192 + $0x90] sm:$0xff]
      %v222 = vld [vmem:[%s192 + $0x98] sm:$0xff]
      %v223 = vld [vmem:[%s192 + $0xa0] sm:$0xff]
      %v224 = vld [vmem:[%s192 + $0xa8] sm:$0xff]
      %v225 = vld [vmem:[%s192 + $0xb0] sm:$0xff]
      %v226 = vld [vmem:[%s192 + $0xb8] sm:$0xff]
      %v227 = vld [vmem:[%s192 + $0xc0] sm:$0xff]
      %v228 = vld [vmem:[%s2] sm:$0xff]
      %v229 = vld [vmem:[%s2 + $0x8] sm:$0xff]
      %v230 = vld [vmem:[%s2 + $0x10] sm:$0xff]
      %v231 = vld [vmem:[%s2 + $0x18] sm:$0xff]
      %233 = vset.pattern.permute.xlu0 0
      %234 = vperm.xlu0 %233, %v228
      %v235 = vpop.permute.xlu0 %234
      %238 = vset.pattern.permute.xlu0 0
      %239 = vperm.xlu0 %238, %v229
      %v240 = vpop.permute.xlu0 %239
      %243 = vset.pattern.permute.xlu0 0
      %244 = vperm.xlu0 %243, %v230
      %v245 = vpop.permute.xlu0 %244
      %248 = vset.pattern.permute.xlu0 0
      %249 = vperm.xlu0 %248, %v231
      %v250 = vpop.permute.xlu0 %249
      %vm252 = vcmask 261120
      %v254 = vsel %vm252, %v199, 0
      %v257 = vsel %vm252, %v200, 0
      %v260 = vsel %vm252, %v201, 0
      %v263 = vsel %vm252, %v202, 0
      %v266 = vsel %vm252, %v203, 0
      %v269 = vsel %vm252, %v204, 0
      %v272 = vsel %vm252, %v205, 0
      %v275 = vsel %vm252, %v206, 0
      %v278 = vsel %vm252, %v207, 0
      %v281 = vsel %vm252, %v208, 0
      %v284 = vsel %vm252, %v209, 0
      %v287 = vsel %vm252, %v210, 0
      %v290 = vsel %vm252, %v211, 0
      %v293 = vsel %vm252, %v212, 0
      %v296 = vsel %vm252, %v213, 0
      %v299 = vsel %vm252, %v214, 0
      %v302 = vsel %vm252, %v215, 0
      %v305 = vsel %vm252, %v216, 0
      %v308 = vsel %vm252, %v217, 0
      %v311 = vsel %vm252, %v218, 0
      %v314 = vsel %vm252, %v219, 0
      %v317 = vsel %vm252, %v220, 0
      %v320 = vsel %vm252, %v221, 0
      %v323 = vsel %vm252, %v222, 0
      %v326 = vsel %vm252, %v223, 0
      %v329 = vsel %vm252, %v224, 0
      %v332 = vsel %vm252, %v225, 0
      %v335 = vsel %vm252, %v226, 0
      %v338 = vsel %vm252, %v227, 0
      %340 = vmatpush.xpose.msra.mxu0 %v311
      %341 = vmatpush.xpose.msra.mxu0 %v308
      %342 = vmatpush.xpose.msra.mxu0 %v305
      %343 = vmatpush.xpose.msra.mxu0 %v302
      %344 = vmatpush.xpose.msra.mxu0 %v299
      %345 = vmatpush.xpose.msra.mxu0 %v296
      %346 = vmatpush.xpose.msra.mxu0 %v293
      %347 = vmatpush.xpose.msra.mxu0 %v290
      %348 = vmatpush.xpose.msra.mxu0 %v287
      %349 = vmatpush.xpose.msra.mxu0 %v284
      %350 = vmatpush.xpose.msra.mxu0 %v281
      %351 = vmatpush.xpose.msra.mxu0 %v278
      %352 = vmatpush.xpose.msra.mxu0 %v275
      %353 = vmatpush.xpose.msra.mxu0 %v272
      %354 = vmatpush.xpose.msra.mxu0 %v269
      %355 = vmatpush.xpose.msra.mxu0 %v266
      %356 = vmatmul.f32.gmra.mxu0 %v254
      %v357 = vpop.f32.mrf.mxu0
      %v358 = vadd.f32 %v235, %v357
      %359 = vmatmul.f32.gmra.mxu0 %v257
      %v360 = vpop.f32.mrf.mxu0
      %v361 = vadd.f32 %v240, %v360
      %362 = vmatmul.f32.gmra.mxu0 %v260
      %v363 = vpop.f32.mrf.mxu0
      %v364 = vadd.f32 %v245, %v363
      %365 = vmatmul.f32.gmra.mxu0 %v263
      %v366 = vpop.f32.mrf.mxu0
      %v367 = vadd.f32 %v250, %v366
      %368 = vdwg.mxu0
      %369 = vmatpush.xpose.msra.mxu0 0.0
      %370 = vmatpush.xpose.msra.mxu0 0.0
      %371 = vmatpush.xpose.msra.mxu0 0.0
      %372 = vmatpush.xpose.msra.mxu0 0.0
      %373 = vmatpush.xpose.msra.mxu0 0.0
      %374 = vmatpush.xpose.msra.mxu0 0.0
      %375 = vmatpush.xpose.msra.mxu0 0.0
      %376 = vmatpush.xpose.msra.mxu0 %v338
      %377 = vmatpush.xpose.msra.mxu0 %v335
      %378 = vmatpush.xpose.msra.mxu0 %v332
      %379 = vmatpush.xpose.msra.mxu0 %v329
      %380 = vmatpush.xpose.msra.mxu0 %v326
      %381 = vmatpush.xpose.msra.mxu0 %v323
      %382 = vmatpush.xpose.msra.mxu0 %v320
      %383 = vmatpush.xpose.msra.mxu0 %v317
      %384 = vmatpush.xpose.msra.mxu0 %v314
      %385 = vmatmul.f32.gmra.mxu0 %v254
      %v386 = vpop.f32.mrf.mxu0
      %v387 = vadd.f32 %v235, %v386
      %388 = vmatmul.f32.gmra.mxu0 %v257
      %v389 = vpop.f32.mrf.mxu0
      %v390 = vadd.f32 %v240, %v389
      %391 = vmatmul.f32.gmra.mxu0 %v260
      %v392 = vpop.f32.mrf.mxu0
      %v393 = vadd.f32 %v245, %v392
      %394 = vmatmul.f32.gmra.mxu0 %v263
      %v395 = vpop.f32.mrf.mxu0
      %v396 = vadd.f32 %v250, %v395
      %397 = vdwg.mxu0
      %v398 = vtanh.pop %v358
      %v399 = vtanh.pop %v387
      %v400 = vtanh.pop %v361
      %v401 = vtanh.pop %v390
      %v402 = vtanh.pop %v364
      %v403 = vtanh.pop %v393
      %v404 = vtanh.pop %v367
      %v405 = vtanh.pop %v396
      %p406 = scmp.eq.s32.totalorder %s19, 0
      // Predicated region
      $region33: #{attention_forward.2} parent=31 // pred_check
        %p407 = pneg %p406
      $region34: #{attention_forward.2} parent=31 // pred_check_branch
        %409 = sbr.rel (%p407) target = $region36
      $region35: #{attention_forward.2} parent=31 // pred_region
        %vm410 = vcmask 7168
        %411 = vst.msk [vmem:[%s198] sm:$0xff] %vm410, 0.0
        %412 = vst.msk [vmem:[%s198 + $0x8] sm:$0xff] %vm410, 0.0
        %413 = vst.msk [vmem:[%s198 + $0x10] sm:$0xff] %vm410, 0.0
        %414 = vst.msk [vmem:[%s198 + $0x18] sm:$0xff] %vm410, 0.0
      $region36: #{attention_forward.2} parent=31 // pred_fallthru
        _
      %v415 = vld [vmem:[%s198] sm:$0xff]
      %v416 = vld [vmem:[%s198 + $0x8] sm:$0xff]
      %v417 = vld [vmem:[%s198 + $0x10] sm:$0xff]
      %v418 = vld [vmem:[%s198 + $0x18] sm:$0xff]
      %vm419 = vcmask 588800
      %v420 = vsel %vm419, %v399, 0.0
      %v421 = vadd.f32 %v398, %v420
      %422 = vadd.xlane.f32.xlu0 %v421
      %v423 = vpop.xlane.xlu0 %422
      %v424 = vsel %vm419, %v401, 0.0
      %v425 = vadd.f32 %v400, %v424
      %426 = vadd.xlane.f32.xlu0 %v425
      %v427 = vpop.xlane.xlu0 %426
      %v428 = vsel %vm419, %v403, 0.0
      %v429 = vadd.f32 %v402, %v428
      %430 = vadd.xlane.f32.xlu0 %v429
      %v431 = vpop.xlane.xlu0 %430
      %v432 = vsel %vm419, %v405, 0.0
      %v433 = vadd.f32 %v404, %v432
      %434 = vadd.xlane.f32.xlu0 %v433
      %v435 = vpop.xlane.xlu0 %434
      %v436 = vadd.f32 %v415, %v423
      %v437 = vadd.f32 %v416, %v427
      %v438 = vadd.f32 %v417, %v431
      %v439 = vadd.f32 %v418, %v435
      %vm440 = vcmask 7168
      %441 = vst.msk [vmem:[%s198] sm:$0xff] %vm440, %v436
      %442 = vst.msk [vmem:[%s198 + $0x8] sm:$0xff] %vm440, %v437
      %443 = vst.msk [vmem:[%s198 + $0x10] sm:$0xff] %vm440, %v438
      %444 = vst.msk [vmem:[%s198 + $0x18] sm:$0xff] %vm440, %v439
      %p445 = scmp.lt.s32.totalorder %s18, 3
      %s446 = scalar_select %p445, %s18, 3
      %s447 = smul.addr %s446, 4
      %s448 = smul.addr %s447, 8
      %s449 = scalar_lea.vmem %s3, %s448
      // Predicated region
      $region37: #{attention_forward.2} parent=31 // pred_check
        %p450 = pneg %p114
      $region38: #{attention_forward.2} parent=31 // pred_check_branch
        %452 = sbr.rel (%p450) target = $region40
      $region39: #{attention_forward.2} parent=31 // pred_region
        _
      $region40: #{attention_forward.2} parent=31 // pred_fallthru
        _
    $region32: #{attention_forward.2} parent=5 // pred_fallthru
      _
    %p453 = scmp.le.s32.totalorder 2, %s9
    // Predicated region
    $region41: #{attention_forward.2} parent=5 // pred_check
      %p454 = pneg %p453
    $region42: #{attention_forward.2} parent=5 // pred_check_branch
      %456 = sbr.rel (%p454) target = $region44
    $region43: #{attention_forward.2} parent=5 // pred_region
      %s457 = ssub.s32 %s9, 2
      // Predicated region
      $region45: #{attention_forward.2} parent=43 // pred_check
        %p458 = pneg %p120
      $region46: #{attention_forward.2} parent=43 // pred_check_branch
        %460 = sbr.rel (%p458) target = $region48
      $region47: #{attention_forward.2} parent=43 // pred_region
        %p461 = scmp.lt.s32.totalorder %s20, 3
        %s462 = scalar_select %p461, %s20, 3
        %s463 = smul.addr %s462, 4
        %s464 = smul.addr %s463, 8
        %s465 = scalar_lea.vmem %s3, %s464
      $region48: #{attention_forward.2} parent=43 // pred_fallthru
        _
    $region44: #{attention_forward.2} parent=5 // pred_fallthru
      _
  $region6: #{attention_forward.2} parent=0 // loop_footer
    %s13 = sadd.s32 1, %s9
  $region7: #{attention_forward.2} parent=0 // loop_footer_branch
    %8 = sbr.rel target = $region3
  $region8: #{attention_forward.2} parent=0 // loop_exit
    _

</llo_original>
